<compile_context>
chip_gen: v5e
topology: v5e:2x2
jax: 0.10.0
libtpu: 0.0.40
codegen_flags: <defaults>
</compile_context>

<pallas_src>
import math
from functools import partial

import jax
import jax.numpy as jnp
from jax import lax
from jax.experimental import pallas as pl
from jax.experimental.pallas import tpu as pltpu

# ---- problem configuration (small, consistent with the module) ----
BATCH = 2
SEQ = 8
D_MODEL = 32
NUM_HEADS = 4
D_K = D_MODEL // NUM_HEADS


def _mha_kernel(qkv_ref, w_qkv_ref, b_qkv_ref, wo_ref, bo_ref, o_ref,
                *, batch, seq, num_heads, d_k, d_model):
    # All refs are whole-array VMEM tiles:
    #   qkv: (B*S, 3D), w_qkv: (3D, 3D) block-diag, b_qkv: (1, 3D),
    #   wo: (D, D), bo: (1, D), output: (B*S, D).
    x = qkv_ref[...]

    # Fused Q/K/V projection: one single-pass bf16 MXU dot, f32 accumulation.
    # Q columns (0:D) are pre-scaled by 1/sqrt(d_k) via the prepared params.
    proj = jnp.dot(x.astype(jnp.bfloat16),
                   w_qkv_ref[...].astype(jnp.bfloat16),
                   preferred_element_type=jnp.float32) + b_qkv_ref[...]

    bo = bo_ref[...]            # (1, D), hoisted
    # Contract dim 1 of both operands (q_rows x k_rows) -> no transpose.
    qk_dims = (((1,), (1,)), ((), ()))

    # TODO(synk): optional `mask` argument (masked_fill with -1e9) not implemented;
    # this kernel reproduces the mask=None path of the reference module.
    out_rows = []
    for b in range(batch):          # static: attention never crosses batches
        rs = b * seq
        qb = proj[rs:rs + seq, 0:d_model]                    # already scaled
        kb = proj[rs:rs + seq, d_model:2 * d_model]
        vb = proj[rs:rs + seq, 2 * d_model:3 * d_model]

        acc = None                  # per-batch output rows, accumulated over heads
        for h in range(num_heads):  # static: num_heads is small & fixed
            lo = h * d_k
            qh = qb[:, lo:lo + d_k].astype(jnp.bfloat16)     # (S, d_k)
            kh = kb[:, lo:lo + d_k].astype(jnp.bfloat16)     # (S, d_k)
            vh = vb[:, lo:lo + d_k].astype(jnp.bfloat16)     # (S, d_k)

            # bf16 operands, f32 accumulation on the MXU.
            scores = lax.dot_general(qh, kh, qk_dims,
                                     preferred_element_type=jnp.float32)
            # Softmax math in f32 (no bf16 VPU/EUP on v5e).
            scores = scores - jnp.max(scores, axis=-1, keepdims=True)
            probs = jnp.exp(scores)                          # un-normalized
            inv_l = pl.reciprocal(jnp.sum(probs, axis=-1, keepdims=True),
                                  approx=False)              # exact: 64 values total

            # Deferred normalization: scale the (S, d_k) context, not (S, S) probs.
            ctx = jnp.dot(probs.astype(jnp.bfloat16), vh,
                          preferred_element_type=jnp.float32) * inv_l

            # Fold the head re-concat into the output projection:
            # ctx @ W_o[h*d_k:(h+1)*d_k, :]  (static slice of the weight).
            contrib = jnp.dot(ctx.astype(jnp.bfloat16),
                              wo_ref[lo:lo + d_k, :].astype(jnp.bfloat16),
                              preferred_element_type=jnp.float32)
            acc = contrib if acc is None else acc + contrib

        out_rows.append(acc + bo)

    # One full-block store instead of per-batch partial (masked) stores.
    o_ref[...] = jnp.concatenate(out_rows, axis=0).astype(o_ref.dtype)


def _prepare_params(params, num_heads):
    """One-time static parameter transform:
       * fold 1/sqrt(d_k) into W_q / b_q,
       * pack W_q/W_k/W_v into a block-diagonal (3D, 3D) weight,
       * pack biases into a single (1, 3D) row."""
    d_model = params["wq"].shape[0]
    d_k = d_model // num_heads
    scale = 1.0 / math.sqrt(d_k)

    wq = params["wq"] * scale
    bq = params["bq"] * scale

    w_qkv = jnp.zeros((3 * d_model, 3 * d_model), params["wq"].dtype)
    w_qkv = w_qkv.at[0:d_model, 0:d_model].set(wq)
    w_qkv = w_qkv.at[d_model:2 * d_model, d_model:2 * d_model].set(params["wk"])
    w_qkv = w_qkv.at[2 * d_model:, 2 * d_model:].set(params["wv"])
    b_qkv = jnp.concatenate([bq, params["bk"], params["bv"]], axis=-1)

    return {"w_qkv": w_qkv, "b_qkv": b_qkv,
            "wo": params["wo"], "bo": params["bo"]}


def multi_head_attention(q, k, v, prepped, *, num_heads=NUM_HEADS):
    """q, k, v: (B, S, D) float32.  prepped: output of _prepare_params."""
    B, S, D = q.shape
    d_k = D // num_heads

    kernel = partial(_mha_kernel, batch=B, seq=S, num_heads=num_heads,
                     d_k=d_k, d_model=D)

    # Single invocation (no grid): total working set is a few tens of KB, so the
    # whole problem lives in VMEM; whole-array BlockSpecs, no pipelining needed.
    vmem = pl.BlockSpec(memory_space=pltpu.MemorySpace.VMEM)

    qkv = jnp.concatenate(
        [q.reshape(B * S, D), k.reshape(B * S, D), v.reshape(B * S, D)], axis=-1)

    out2 = pl.pallas_call(
        kernel,
        out_shape=jax.ShapeDtypeStruct((B * S, D), q.dtype),
        in_specs=[vmem] * 5,
        out_specs=vmem,
    )(qkv, prepped["w_qkv"], prepped["b_qkv"], prepped["wo"], prepped["bo"])

    return out2.reshape(B, S, D)


def _init_params(key, d_model):
    """Deterministic params mimicking nn.Linear's uniform(-1/sqrt(in), 1/sqrt(in)) init.
    Weights stored as (in, out) i.e. already transposed vs torch's (out, in)."""
    bound = 1.0 / math.sqrt(d_model)
    names = ["wq", "bq", "wk", "bk", "wv", "bv", "wo", "bo"]
    keys = jax.random.split(key, len(names))
    params = {}
    for name, kk in zip(names, keys):
        shape = (d_model, d_model) if name.startswith("w") else (1, d_model)
        params[name] = jax.random.uniform(kk, shape, jnp.float32, -bound, bound)
    return params


def _reference(q, k, v, params, num_heads):
    """Plain-JAX f32 reference reproducing the PyTorch forward (mask=None)."""
    B, S, D = q.shape
    d_k = D // num_heads

    def proj(x, w, b):
        return x @ w + b  # w is (in, out)

    def split_heads(x):
        return x.reshape(B, S, num_heads, d_k).transpose(0, 2, 1, 3)  # (B,H,S,dk)

    Q = split_heads(proj(q, params["wq"], params["bq"]))
    K = split_heads(proj(k, params["wk"], params["bk"]))
    V = split_heads(proj(v, params["wv"], params["bv"]))

    scores = jnp.einsum("bhqd,bhkd->bhqk", Q, K) / math.sqrt(d_k)
    probs = jax.nn.softmax(scores, axis=-1)
    out = jnp.einsum("bhqk,bhkd->bhqd", probs, V)
    out = out.transpose(0, 2, 1, 3).reshape(B, S, D)
    return proj(out, params["wo"], params["bo"])


if __name__ == "__main__":
    root = jax.random.PRNGKey(0)
    kq, kk, kv, kp = jax.random.split(root, 4)

    q = jax.random.normal(kq, (BATCH, SEQ, D_MODEL), jnp.float32)
    k = jax.random.normal(kk, (BATCH, SEQ, D_MODEL), jnp.float32)
    v = jax.random.normal(kv, (BATCH, SEQ, D_MODEL), jnp.float32)
    params = _init_params(kp, D_MODEL)
    prepped = _prepare_params(params, NUM_HEADS)   # one-time static transform

    out = multi_head_attention(q, k, v, prepped, num_heads=NUM_HEADS)
    out = jax.block_until_ready(out)

    ref = _reference(q, k, v, params, NUM_HEADS)
    assert out.shape == (BATCH, SEQ, D_MODEL)
    # Tolerance 5e-3: bf16 MXU operands (single-pass MXU, f32 accumulation)
    # introduce a few 1e-3 of absolute error through the projection + attention
    # chain; the softmax reciprocal is now exact and contributes nothing.
    assert jnp.allclose(out, ref, atol=5e-3, rtol=5e-3), "mismatch vs reference"

    print("KERNEL_OK")
</pallas_src>

<mosaic_0001>
module attributes {stable_mosaic.version = 11 : i64} {
  func.func @_mha_kernel(%arg0: memref<16x96xf32, #tpu.memory_space<vmem>>, %arg1: memref<96x96xf32, #tpu.memory_space<vmem>>, %arg2: memref<1x96xf32, #tpu.memory_space<vmem>>, %arg3: memref<32x32xf32, #tpu.memory_space<vmem>>, %arg4: memref<1x32xf32, #tpu.memory_space<vmem>>, %arg5: memref<16x32xf32, #tpu.memory_space<vmem>>) attributes {dimension_semantics = [], scalar_prefetch = 0 : i64, scratch_operands = 0 : i64, tpu.core_type = #tpu.core_type<tc>} {
    %c0 = arith.constant 0 : index
    %c0_0 = arith.constant 0 : index
    %0 = vector.load %arg0[%c0, %c0_0] : memref<16x96xf32, #tpu.memory_space<vmem>>, vector<16x96xf32>
    %1 = arith.truncf %0 : vector<16x96xf32> to vector<16x96xbf16>
    %c0_1 = arith.constant 0 : index
    %c0_2 = arith.constant 0 : index
    %2 = vector.load %arg1[%c0_1, %c0_2] : memref<96x96xf32, #tpu.memory_space<vmem>>, vector<96x96xf32>
    %3 = arith.truncf %2 : vector<96x96xf32> to vector<96x96xbf16>
    %cst = arith.constant dense<0.000000e+00> : vector<16x96xf32>
    %4 = tpu.matmul %1, %3, %cst {dimension_numbers = #tpu.dot_dimension_numbers<[1], [0], [0], [1], [0, 0, 1, 1], [], []>} : vector<16x96xbf16>, vector<96x96xbf16>, vector<16x96xf32> -> vector<16x96xf32>
    %c0_3 = arith.constant 0 : index
    %c0_4 = arith.constant 0 : index
    %5 = vector.load %arg2[%c0_3, %c0_4] : memref<1x96xf32, #tpu.memory_space<vmem>>, vector<1x96xf32>
    %6 = vector.broadcast %5 : vector<1x96xf32> to vector<16x96xf32>
    %7 = arith.addf %4, %6 : vector<16x96xf32>
    %c0_5 = arith.constant 0 : index
    %c0_6 = arith.constant 0 : index
    %8 = vector.load %arg4[%c0_5, %c0_6] : memref<1x32xf32, #tpu.memory_space<vmem>>, vector<1x32xf32>
    %9 = vector.extract_strided_slice %7 {offsets = [0, 0], sizes = [8, 32], strides = [1, 1]} : vector<16x96xf32> to vector<8x32xf32>
    %10 = vector.extract_strided_slice %7 {offsets = [0, 32], sizes = [8, 32], strides = [1, 1]} : vector<16x96xf32> to vector<8x32xf32>
    %11 = vector.extract_strided_slice %7 {offsets = [0, 64], sizes = [8, 32], strides = [1, 1]} : vector<16x96xf32> to vector<8x32xf32>
    %12 = vector.extract_strided_slice %9 {offsets = [0, 0], sizes = [8, 8], strides = [1, 1]} : vector<8x32xf32> to vector<8x8xf32>
    %13 = arith.truncf %12 : vector<8x8xf32> to vector<8x8xbf16>
    %14 = vector.extract_strided_slice %10 {offsets = [0, 0], sizes = [8, 8], strides = [1, 1]} : vector<8x32xf32> to vector<8x8xf32>
    %15 = arith.truncf %14 : vector<8x8xf32> to vector<8x8xbf16>
    %16 = vector.extract_strided_slice %11 {offsets = [0, 0], sizes = [8, 8], strides = [1, 1]} : vector<8x32xf32> to vector<8x8xf32>
    %17 = arith.truncf %16 : vector<8x8xf32> to vector<8x8xbf16>
    %cst_7 = arith.constant dense<0.000000e+00> : vector<8x8xf32>
    %18 = tpu.matmul %13, %15, %cst_7 {dimension_numbers = #tpu.dot_dimension_numbers<[1], [1], [0], [0], [0, 0, 1, 0], [], []>} : vector<8x8xbf16>, vector<8x8xbf16>, vector<8x8xf32> -> vector<8x8xf32>
    %cst_8 = arith.constant dense<0xFF800000> : vector<8xf32>
    %19 = vector.multi_reduction <maximumf>, %18, %cst_8 [1] : vector<8x8xf32> to vector<8xf32>
    %20 = vector.shape_cast %19 : vector<8xf32> to vector<8x1xf32>
    %21 = vector.broadcast %20 : vector<8x1xf32> to vector<8x8xf32>
    %22 = arith.subf %18, %21 : vector<8x8xf32>
    %23 = math.exp %22 : vector<8x8xf32>
    %cst_9 = arith.constant dense<0.000000e+00> : vector<8xf32>
    %24 = vector.multi_reduction <add>, %23, %cst_9 [1] : vector<8x8xf32> to vector<8xf32>
    %25 = vector.shape_cast %24 : vector<8xf32> to vector<8x1xf32>
    %26 = tpu.reciprocal %25 : vector<8x1xf32> -> vector<8x1xf32>
    %27 = arith.truncf %23 : vector<8x8xf32> to vector<8x8xbf16>
    %cst_10 = arith.constant dense<0.000000e+00> : vector<8x8xf32>
    %28 = tpu.matmul %27, %17, %cst_10 {dimension_numbers = #tpu.dot_dimension_numbers<[1], [0], [0], [1], [0, 0, 1, 1], [], []>} : vector<8x8xbf16>, vector<8x8xbf16>, vector<8x8xf32> -> vector<8x8xf32>
    %29 = vector.broadcast %26 : vector<8x1xf32> to vector<8x8xf32>
    %30 = arith.mulf %28, %29 : vector<8x8xf32>
    %31 = arith.truncf %30 : vector<8x8xf32> to vector<8x8xbf16>
    %c0_11 = arith.constant 0 : index
    %c0_12 = arith.constant 0 : index
    %32 = vector.load %arg3[%c0_11, %c0_12] : memref<32x32xf32, #tpu.memory_space<vmem>>, vector<8x32xf32>
    %33 = arith.truncf %32 : vector<8x32xf32> to vector<8x32xbf16>
    %cst_13 = arith.constant dense<0.000000e+00> : vector<8x32xf32>
    %34 = tpu.matmul %31, %33, %cst_13 {dimension_numbers = #tpu.dot_dimension_numbers<[1], [0], [0], [1], [0, 0, 1, 1], [], []>} : vector<8x8xbf16>, vector<8x32xbf16>, vector<8x32xf32> -> vector<8x32xf32>
    %35 = vector.extract_strided_slice %9 {offsets = [0, 8], sizes = [8, 8], strides = [1, 1]} : vector<8x32xf32> to vector<8x8xf32>
    %36 = arith.truncf %35 : vector<8x8xf32> to vector<8x8xbf16>
    %37 = vector.extract_strided_slice %10 {offsets = [0, 8], sizes = [8, 8], strides = [1, 1]} : vector<8x32xf32> to vector<8x8xf32>
    %38 = arith.truncf %37 : vector<8x8xf32> to vector<8x8xbf16>
    %39 = vector.extract_strided_slice %11 {offsets = [0, 8], sizes = [8, 8], strides = [1, 1]} : vector<8x32xf32> to vector<8x8xf32>
    %40 = arith.truncf %39 : vector<8x8xf32> to vector<8x8xbf16>
    %cst_14 = arith.constant dense<0.000000e+00> : vector<8x8xf32>
    %41 = tpu.matmul %36, %38, %cst_14 {dimension_numbers = #tpu.dot_dimension_numbers<[1], [1], [0], [0], [0, 0, 1, 0], [], []>} : vector<8x8xbf16>, vector<8x8xbf16>, vector<8x8xf32> -> vector<8x8xf32>
    %cst_15 = arith.constant dense<0xFF800000> : vector<8xf32>
    %42 = vector.multi_reduction <maximumf>, %41, %cst_15 [1] : vector<8x8xf32> to vector<8xf32>
    %43 = vector.shape_cast %42 : vector<8xf32> to vector<8x1xf32>
    %44 = vector.broadcast %43 : vector<8x1xf32> to vector<8x8xf32>
    %45 = arith.subf %41, %44 : vector<8x8xf32>
    %46 = math.exp %45 : vector<8x8xf32>
    %cst_16 = arith.constant dense<0.000000e+00> : vector<8xf32>
    %47 = vector.multi_reduction <add>, %46, %cst_16 [1] : vector<8x8xf32> to vector<8xf32>
    %48 = vector.shape_cast %47 : vector<8xf32> to vector<8x1xf32>
    %49 = tpu.reciprocal %48 : vector<8x1xf32> -> vector<8x1xf32>
    %50 = arith.truncf %46 : vector<8x8xf32> to vector<8x8xbf16>
    %cst_17 = arith.constant dense<0.000000e+00> : vector<8x8xf32>
    %51 = tpu.matmul %50, %40, %cst_17 {dimension_numbers = #tpu.dot_dimension_numbers<[1], [0], [0], [1], [0, 0, 1, 1], [], []>} : vector<8x8xbf16>, vector<8x8xbf16>, vector<8x8xf32> -> vector<8x8xf32>
    %52 = vector.broadcast %49 : vector<8x1xf32> to vector<8x8xf32>
    %53 = arith.mulf %51, %52 : vector<8x8xf32>
    %54 = arith.truncf %53 : vector<8x8xf32> to vector<8x8xbf16>
    %c8 = arith.constant 8 : index
    %c0_18 = arith.constant 0 : index
    %55 = vector.load %arg3[%c8, %c0_18] : memref<32x32xf32, #tpu.memory_space<vmem>>, vector<8x32xf32>
    %56 = arith.truncf %55 : vector<8x32xf32> to vector<8x32xbf16>
    %cst_19 = arith.constant dense<0.000000e+00> : vector<8x32xf32>
    %57 = tpu.matmul %54, %56, %cst_19 {dimension_numbers = #tpu.dot_dimension_numbers<[1], [0], [0], [1], [0, 0, 1, 1], [], []>} : vector<8x8xbf16>, vector<8x32xbf16>, vector<8x32xf32> -> vector<8x32xf32>
    %58 = arith.addf %34, %57 : vector<8x32xf32>
    %59 = vector.extract_strided_slice %9 {offsets = [0, 16], sizes = [8, 8], strides = [1, 1]} : vector<8x32xf32> to vector<8x8xf32>
    %60 = arith.truncf %59 : vector<8x8xf32> to vector<8x8xbf16>
    %61 = vector.extract_strided_slice %10 {offsets = [0, 16], sizes = [8, 8], strides = [1, 1]} : vector<8x32xf32> to vector<8x8xf32>
    %62 = arith.truncf %61 : vector<8x8xf32> to vector<8x8xbf16>
    %63 = vector.extract_strided_slice %11 {offsets = [0, 16], sizes = [8, 8], strides = [1, 1]} : vector<8x32xf32> to vector<8x8xf32>
    %64 = arith.truncf %63 : vector<8x8xf32> to vector<8x8xbf16>
    %cst_20 = arith.constant dense<0.000000e+00> : vector<8x8xf32>
    %65 = tpu.matmul %60, %62, %cst_20 {dimension_numbers = #tpu.dot_dimension_numbers<[1], [1], [0], [0], [0, 0, 1, 0], [], []>} : vector<8x8xbf16>, vector<8x8xbf16>, vector<8x8xf32> -> vector<8x8xf32>
    %cst_21 = arith.constant dense<0xFF800000> : vector<8xf32>
    %66 = vector.multi_reduction <maximumf>, %65, %cst_21 [1] : vector<8x8xf32> to vector<8xf32>
    %67 = vector.shape_cast %66 : vector<8xf32> to vector<8x1xf32>
    %68 = vector.broadcast %67 : vector<8x1xf32> to vector<8x8xf32>
    %69 = arith.subf %65, %68 : vector<8x8xf32>
    %70 = math.exp %69 : vector<8x8xf32>
    %cst_22 = arith.constant dense<0.000000e+00> : vector<8xf32>
    %71 = vector.multi_reduction <add>, %70, %cst_22 [1] : vector<8x8xf32> to vector<8xf32>
    %72 = vector.shape_cast %71 : vector<8xf32> to vector<8x1xf32>
    %73 = tpu.reciprocal %72 : vector<8x1xf32> -> vector<8x1xf32>
    %74 = arith.truncf %70 : vector<8x8xf32> to vector<8x8xbf16>
    %cst_23 = arith.constant dense<0.000000e+00> : vector<8x8xf32>
    %75 = tpu.matmul %74, %64, %cst_23 {dimension_numbers = #tpu.dot_dimension_numbers<[1], [0], [0], [1], [0, 0, 1, 1], [], []>} : vector<8x8xbf16>, vector<8x8xbf16>, vector<8x8xf32> -> vector<8x8xf32>
    %76 = vector.broadcast %73 : vector<8x1xf32> to vector<8x8xf32>
    %77 = arith.mulf %75, %76 : vector<8x8xf32>
    %78 = arith.truncf %77 : vector<8x8xf32> to vector<8x8xbf16>
    %c16 = arith.constant 16 : index
    %c0_24 = arith.constant 0 : index
    %79 = vector.load %arg3[%c16, %c0_24] : memref<32x32xf32, #tpu.memory_space<vmem>>, vector<8x32xf32>
    %80 = arith.truncf %79 : vector<8x32xf32> to vector<8x32xbf16>
    %cst_25 = arith.constant dense<0.000000e+00> : vector<8x32xf32>
    %81 = tpu.matmul %78, %80, %cst_25 {dimension_numbers = #tpu.dot_dimension_numbers<[1], [0], [0], [1], [0, 0, 1, 1], [], []>} : vector<8x8xbf16>, vector<8x32xbf16>, vector<8x32xf32> -> vector<8x32xf32>
    %82 = arith.addf %58, %81 : vector<8x32xf32>
    %83 = vector.extract_strided_slice %9 {offsets = [0, 24], sizes = [8, 8], strides = [1, 1]} : vector<8x32xf32> to vector<8x8xf32>
    %84 = arith.truncf %83 : vector<8x8xf32> to vector<8x8xbf16>
    %85 = vector.extract_strided_slice %10 {offsets = [0, 24], sizes = [8, 8], strides = [1, 1]} : vector<8x32xf32> to vector<8x8xf32>
    %86 = arith.truncf %85 : vector<8x8xf32> to vector<8x8xbf16>
    %87 = vector.extract_strided_slice %11 {offsets = [0, 24], sizes = [8, 8], strides = [1, 1]} : vector<8x32xf32> to vector<8x8xf32>
    %88 = arith.truncf %87 : vector<8x8xf32> to vector<8x8xbf16>
    %cst_26 = arith.constant dense<0.000000e+00> : vector<8x8xf32>
    %89 = tpu.matmul %84, %86, %cst_26 {dimension_numbers = #tpu.dot_dimension_numbers<[1], [1], [0], [0], [0, 0, 1, 0], [], []>} : vector<8x8xbf16>, vector<8x8xbf16>, vector<8x8xf32> -> vector<8x8xf32>
    %cst_27 = arith.constant dense<0xFF800000> : vector<8xf32>
    %90 = vector.multi_reduction <maximumf>, %89, %cst_27 [1] : vector<8x8xf32> to vector<8xf32>
    %91 = vector.shape_cast %90 : vector<8xf32> to vector<8x1xf32>
    %92 = vector.broadcast %91 : vector<8x1xf32> to vector<8x8xf32>
    %93 = arith.subf %89, %92 : vector<8x8xf32>
    %94 = math.exp %93 : vector<8x8xf32>
    %cst_28 = arith.constant dense<0.000000e+00> : vector<8xf32>
    %95 = vector.multi_reduction <add>, %94, %cst_28 [1] : vector<8x8xf32> to vector<8xf32>
    %96 = vector.shape_cast %95 : vector<8xf32> to vector<8x1xf32>
    %97 = tpu.reciprocal %96 : vector<8x1xf32> -> vector<8x1xf32>
    %98 = arith.truncf %94 : vector<8x8xf32> to vector<8x8xbf16>
    %cst_29 = arith.constant dense<0.000000e+00> : vector<8x8xf32>
    %99 = tpu.matmul %98, %88, %cst_29 {dimension_numbers = #tpu.dot_dimension_numbers<[1], [0], [0], [1], [0, 0, 1, 1], [], []>} : vector<8x8xbf16>, vector<8x8xbf16>, vector<8x8xf32> -> vector<8x8xf32>
    %100 = vector.broadcast %97 : vector<8x1xf32> to vector<8x8xf32>
    %101 = arith.mulf %99, %100 : vector<8x8xf32>
    %102 = arith.truncf %101 : vector<8x8xf32> to vector<8x8xbf16>
    %c24 = arith.constant 24 : index
    %c0_30 = arith.constant 0 : index
    %103 = vector.load %arg3[%c24, %c0_30] : memref<32x32xf32, #tpu.memory_space<vmem>>, vector<8x32xf32>
    %104 = arith.truncf %103 : vector<8x32xf32> to vector<8x32xbf16>
    %cst_31 = arith.constant dense<0.000000e+00> : vector<8x32xf32>
    %105 = tpu.matmul %102, %104, %cst_31 {dimension_numbers = #tpu.dot_dimension_numbers<[1], [0], [0], [1], [0, 0, 1, 1], [], []>} : vector<8x8xbf16>, vector<8x32xbf16>, vector<8x32xf32> -> vector<8x32xf32>
    %106 = arith.addf %82, %105 : vector<8x32xf32>
    %107 = vector.broadcast %8 : vector<1x32xf32> to vector<8x32xf32>
    %108 = arith.addf %106, %107 : vector<8x32xf32>
    %109 = vector.extract_strided_slice %7 {offsets = [8, 0], sizes = [8, 32], strides = [1, 1]} : vector<16x96xf32> to vector<8x32xf32>
    %110 = vector.extract_strided_slice %7 {offsets = [8, 32], sizes = [8, 32], strides = [1, 1]} : vector<16x96xf32> to vector<8x32xf32>
    %111 = vector.extract_strided_slice %7 {offsets = [8, 64], sizes = [8, 32], strides = [1, 1]} : vector<16x96xf32> to vector<8x32xf32>
    %112 = vector.extract_strided_slice %109 {offsets = [0, 0], sizes = [8, 8], strides = [1, 1]} : vector<8x32xf32> to vector<8x8xf32>
    %113 = arith.truncf %112 : vector<8x8xf32> to vector<8x8xbf16>
    %114 = vector.extract_strided_slice %110 {offsets = [0, 0], sizes = [8, 8], strides = [1, 1]} : vector<8x32xf32> to vector<8x8xf32>
    %115 = arith.truncf %114 : vector<8x8xf32> to vector<8x8xbf16>
    %116 = vector.extract_strided_slice %111 {offsets = [0, 0], sizes = [8, 8], strides = [1, 1]} : vector<8x32xf32> to vector<8x8xf32>
    %117 = arith.truncf %116 : vector<8x8xf32> to vector<8x8xbf16>
    %cst_32 = arith.constant dense<0.000000e+00> : vector<8x8xf32>
    %118 = tpu.matmul %113, %115, %cst_32 {dimension_numbers = #tpu.dot_dimension_numbers<[1], [1], [0], [0], [0, 0, 1, 0], [], []>} : vector<8x8xbf16>, vector<8x8xbf16>, vector<8x8xf32> -> vector<8x8xf32>
    %cst_33 = arith.constant dense<0xFF800000> : vector<8xf32>
    %119 = vector.multi_reduction <maximumf>, %118, %cst_33 [1] : vector<8x8xf32> to vector<8xf32>
    %120 = vector.shape_cast %119 : vector<8xf32> to vector<8x1xf32>
    %121 = vector.broadcast %120 : vector<8x1xf32> to vector<8x8xf32>
    %122 = arith.subf %118, %121 : vector<8x8xf32>
    %123 = math.exp %122 : vector<8x8xf32>
    %cst_34 = arith.constant dense<0.000000e+00> : vector<8xf32>
    %124 = vector.multi_reduction <add>, %123, %cst_34 [1] : vector<8x8xf32> to vector<8xf32>
    %125 = vector.shape_cast %124 : vector<8xf32> to vector<8x1xf32>
    %126 = tpu.reciprocal %125 : vector<8x1xf32> -> vector<8x1xf32>
    %127 = arith.truncf %123 : vector<8x8xf32> to vector<8x8xbf16>
    %cst_35 = arith.constant dense<0.000000e+00> : vector<8x8xf32>
    %128 = tpu.matmul %127, %117, %cst_35 {dimension_numbers = #tpu.dot_dimension_numbers<[1], [0], [0], [1], [0, 0, 1, 1], [], []>} : vector<8x8xbf16>, vector<8x8xbf16>, vector<8x8xf32> -> vector<8x8xf32>
    %129 = vector.broadcast %126 : vector<8x1xf32> to vector<8x8xf32>
    %130 = arith.mulf %128, %129 : vector<8x8xf32>
    %131 = arith.truncf %130 : vector<8x8xf32> to vector<8x8xbf16>
    %c0_36 = arith.constant 0 : index
    %c0_37 = arith.constant 0 : index
    %132 = vector.load %arg3[%c0_36, %c0_37] : memref<32x32xf32, #tpu.memory_space<vmem>>, vector<8x32xf32>
    %133 = arith.truncf %132 : vector<8x32xf32> to vector<8x32xbf16>
    %cst_38 = arith.constant dense<0.000000e+00> : vector<8x32xf32>
    %134 = tpu.matmul %131, %133, %cst_38 {dimension_numbers = #tpu.dot_dimension_numbers<[1], [0], [0], [1], [0, 0, 1, 1], [], []>} : vector<8x8xbf16>, vector<8x32xbf16>, vector<8x32xf32> -> vector<8x32xf32>
    %135 = vector.extract_strided_slice %109 {offsets = [0, 8], sizes = [8, 8], strides = [1, 1]} : vector<8x32xf32> to vector<8x8xf32>
    %136 = arith.truncf %135 : vector<8x8xf32> to vector<8x8xbf16>
    %137 = vector.extract_strided_slice %110 {offsets = [0, 8], sizes = [8, 8], strides = [1, 1]} : vector<8x32xf32> to vector<8x8xf32>
    %138 = arith.truncf %137 : vector<8x8xf32> to vector<8x8xbf16>
    %139 = vector.extract_strided_slice %111 {offsets = [0, 8], sizes = [8, 8], strides = [1, 1]} : vector<8x32xf32> to vector<8x8xf32>
    %140 = arith.truncf %139 : vector<8x8xf32> to vector<8x8xbf16>
    %cst_39 = arith.constant dense<0.000000e+00> : vector<8x8xf32>
    %141 = tpu.matmul %136, %138, %cst_39 {dimension_numbers = #tpu.dot_dimension_numbers<[1], [1], [0], [0], [0, 0, 1, 0], [], []>} : vector<8x8xbf16>, vector<8x8xbf16>, vector<8x8xf32> -> vector<8x8xf32>
    %cst_40 = arith.constant dense<0xFF800000> : vector<8xf32>
    %142 = vector.multi_reduction <maximumf>, %141, %cst_40 [1] : vector<8x8xf32> to vector<8xf32>
    %143 = vector.shape_cast %142 : vector<8xf32> to vector<8x1xf32>
    %144 = vector.broadcast %143 : vector<8x1xf32> to vector<8x8xf32>
    %145 = arith.subf %141, %144 : vector<8x8xf32>
    %146 = math.exp %145 : vector<8x8xf32>
    %cst_41 = arith.constant dense<0.000000e+00> : vector<8xf32>
    %147 = vector.multi_reduction <add>, %146, %cst_41 [1] : vector<8x8xf32> to vector<8xf32>
    %148 = vector.shape_cast %147 : vector<8xf32> to vector<8x1xf32>
    %149 = tpu.reciprocal %148 : vector<8x1xf32> -> vector<8x1xf32>
    %150 = arith.truncf %146 : vector<8x8xf32> to vector<8x8xbf16>
    %cst_42 = arith.constant dense<0.000000e+00> : vector<8x8xf32>
    %151 = tpu.matmul %150, %140, %cst_42 {dimension_numbers = #tpu.dot_dimension_numbers<[1], [0], [0], [1], [0, 0, 1, 1], [], []>} : vector<8x8xbf16>, vector<8x8xbf16>, vector<8x8xf32> -> vector<8x8xf32>
    %152 = vector.broadcast %149 : vector<8x1xf32> to vector<8x8xf32>
    %153 = arith.mulf %151, %152 : vector<8x8xf32>
    %154 = arith.truncf %153 : vector<8x8xf32> to vector<8x8xbf16>
    %c8_43 = arith.constant 8 : index
    %c0_44 = arith.constant 0 : index
    %155 = vector.load %arg3[%c8_43, %c0_44] : memref<32x32xf32, #tpu.memory_space<vmem>>, vector<8x32xf32>
    %156 = arith.truncf %155 : vector<8x32xf32> to vector<8x32xbf16>
    %cst_45 = arith.constant dense<0.000000e+00> : vector<8x32xf32>
    %157 = tpu.matmul %154, %156, %cst_45 {dimension_numbers = #tpu.dot_dimension_numbers<[1], [0], [0], [1], [0, 0, 1, 1], [], []>} : vector<8x8xbf16>, vector<8x32xbf16>, vector<8x32xf32> -> vector<8x32xf32>
    %158 = arith.addf %134, %157 : vector<8x32xf32>
    %159 = vector.extract_strided_slice %109 {offsets = [0, 16], sizes = [8, 8], strides = [1, 1]} : vector<8x32xf32> to vector<8x8xf32>
    %160 = arith.truncf %159 : vector<8x8xf32> to vector<8x8xbf16>
    %161 = vector.extract_strided_slice %110 {offsets = [0, 16], sizes = [8, 8], strides = [1, 1]} : vector<8x32xf32> to vector<8x8xf32>
    %162 = arith.truncf %161 : vector<8x8xf32> to vector<8x8xbf16>
    %163 = vector.extract_strided_slice %111 {offsets = [0, 16], sizes = [8, 8], strides = [1, 1]} : vector<8x32xf32> to vector<8x8xf32>
    %164 = arith.truncf %163 : vector<8x8xf32> to vector<8x8xbf16>
    %cst_46 = arith.constant dense<0.000000e+00> : vector<8x8xf32>
    %165 = tpu.matmul %160, %162, %cst_46 {dimension_numbers = #tpu.dot_dimension_numbers<[1], [1], [0], [0], [0, 0, 1, 0], [], []>} : vector<8x8xbf16>, vector<8x8xbf16>, vector<8x8xf32> -> vector<8x8xf32>
    %cst_47 = arith.constant dense<0xFF800000> : vector<8xf32>
    %166 = vector.multi_reduction <maximumf>, %165, %cst_47 [1] : vector<8x8xf32> to vector<8xf32>
    %167 = vector.shape_cast %166 : vector<8xf32> to vector<8x1xf32>
    %168 = vector.broadcast %167 : vector<8x1xf32> to vector<8x8xf32>
    %169 = arith.subf %165, %168 : vector<8x8xf32>
    %170 = math.exp %169 : vector<8x8xf32>
    %cst_48 = arith.constant dense<0.000000e+00> : vector<8xf32>
    %171 = vector.multi_reduction <add>, %170, %cst_48 [1] : vector<8x8xf32> to vector<8xf32>
    %172 = vector.shape_cast %171 : vector<8xf32> to vector<8x1xf32>
    %173 = tpu.reciprocal %172 : vector<8x1xf32> -> vector<8x1xf32>
    %174 = arith.truncf %170 : vector<8x8xf32> to vector<8x8xbf16>
    %cst_49 = arith.constant dense<0.000000e+00> : vector<8x8xf32>
    %175 = tpu.matmul %174, %164, %cst_49 {dimension_numbers = #tpu.dot_dimension_numbers<[1], [0], [0], [1], [0, 0, 1, 1], [], []>} : vector<8x8xbf16>, vector<8x8xbf16>, vector<8x8xf32> -> vector<8x8xf32>
    %176 = vector.broadcast %173 : vector<8x1xf32> to vector<8x8xf32>
    %177 = arith.mulf %175, %176 : vector<8x8xf32>
    %178 = arith.truncf %177 : vector<8x8xf32> to vector<8x8xbf16>
    %c16_50 = arith.constant 16 : index
    %c0_51 = arith.constant 0 : index
    %179 = vector.load %arg3[%c16_50, %c0_51] : memref<32x32xf32, #tpu.memory_space<vmem>>, vector<8x32xf32>
    %180 = arith.truncf %179 : vector<8x32xf32> to vector<8x32xbf16>
    %cst_52 = arith.constant dense<0.000000e+00> : vector<8x32xf32>
    %181 = tpu.matmul %178, %180, %cst_52 {dimension_numbers = #tpu.dot_dimension_numbers<[1], [0], [0], [1], [0, 0, 1, 1], [], []>} : vector<8x8xbf16>, vector<8x32xbf16>, vector<8x32xf32> -> vector<8x32xf32>
    %182 = arith.addf %158, %181 : vector<8x32xf32>
    %183 = vector.extract_strided_slice %109 {offsets = [0, 24], sizes = [8, 8], strides = [1, 1]} : vector<8x32xf32> to vector<8x8xf32>
    %184 = arith.truncf %183 : vector<8x8xf32> to vector<8x8xbf16>
    %185 = vector.extract_strided_slice %110 {offsets = [0, 24], sizes = [8, 8], strides = [1, 1]} : vector<8x32xf32> to vector<8x8xf32>
    %186 = arith.truncf %185 : vector<8x8xf32> to vector<8x8xbf16>
    %187 = vector.extract_strided_slice %111 {offsets = [0, 24], sizes = [8, 8], strides = [1, 1]} : vector<8x32xf32> to vector<8x8xf32>
    %188 = arith.truncf %187 : vector<8x8xf32> to vector<8x8xbf16>
    %cst_53 = arith.constant dense<0.000000e+00> : vector<8x8xf32>
    %189 = tpu.matmul %184, %186, %cst_53 {dimension_numbers = #tpu.dot_dimension_numbers<[1], [1], [0], [0], [0, 0, 1, 0], [], []>} : vector<8x8xbf16>, vector<8x8xbf16>, vector<8x8xf32> -> vector<8x8xf32>
    %cst_54 = arith.constant dense<0xFF800000> : vector<8xf32>
    %190 = vector.multi_reduction <maximumf>, %189, %cst_54 [1] : vector<8x8xf32> to vector<8xf32>
    %191 = vector.shape_cast %190 : vector<8xf32> to vector<8x1xf32>
    %192 = vector.broadcast %191 : vector<8x1xf32> to vector<8x8xf32>
    %193 = arith.subf %189, %192 : vector<8x8xf32>
    %194 = math.exp %193 : vector<8x8xf32>
    %cst_55 = arith.constant dense<0.000000e+00> : vector<8xf32>
    %195 = vector.multi_reduction <add>, %194, %cst_55 [1] : vector<8x8xf32> to vector<8xf32>
    %196 = vector.shape_cast %195 : vector<8xf32> to vector<8x1xf32>
    %197 = tpu.reciprocal %196 : vector<8x1xf32> -> vector<8x1xf32>
    %198 = arith.truncf %194 : vector<8x8xf32> to vector<8x8xbf16>
    %cst_56 = arith.constant dense<0.000000e+00> : vector<8x8xf32>
    %199 = tpu.matmul %198, %188, %cst_56 {dimension_numbers = #tpu.dot_dimension_numbers<[1], [0], [0], [1], [0, 0, 1, 1], [], []>} : vector<8x8xbf16>, vector<8x8xbf16>, vector<8x8xf32> -> vector<8x8xf32>
    %200 = vector.broadcast %197 : vector<8x1xf32> to vector<8x8xf32>
    %201 = arith.mulf %199, %200 : vector<8x8xf32>
    %202 = arith.truncf %201 : vector<8x8xf32> to vector<8x8xbf16>
    %c24_57 = arith.constant 24 : index
    %c0_58 = arith.constant 0 : index
    %203 = vector.load %arg3[%c24_57, %c0_58] : memref<32x32xf32, #tpu.memory_space<vmem>>, vector<8x32xf32>
    %204 = arith.truncf %203 : vector<8x32xf32> to vector<8x32xbf16>
    %cst_59 = arith.constant dense<0.000000e+00> : vector<8x32xf32>
    %205 = tpu.matmul %202, %204, %cst_59 {dimension_numbers = #tpu.dot_dimension_numbers<[1], [0], [0], [1], [0, 0, 1, 1], [], []>} : vector<8x8xbf16>, vector<8x32xbf16>, vector<8x32xf32> -> vector<8x32xf32>
    %206 = arith.addf %182, %205 : vector<8x32xf32>
    %207 = vector.broadcast %8 : vector<1x32xf32> to vector<8x32xf32>
    %208 = arith.addf %206, %207 : vector<8x32xf32>
    %209 = tpu.concatenate %108, %208 in 0 : vector<8x32xf32>, vector<8x32xf32> -> vector<16x32xf32>
    %c0_60 = arith.constant 0 : index
    %c0_61 = arith.constant 0 : index
    %210 = vector.load %arg5[%c0_60, %c0_61] : memref<16x32xf32, #tpu.memory_space<vmem>>, vector<16x32xf32>
    tpu.vector_store %arg5[%c0_60, %c0_61], %209 {strides = array<i32>} : memref<16x32xf32, #tpu.memory_space<vmem>>, vector<16x32xf32>,
    return
  }
}

</mosaic_0001>

<llo_original>
// kernel: tpu_custom_call.1
$region0: #{tpu_custom_call.1}
  #allocation0 [shape = 'u32[]', space=smem, size = 0x4, offset = 0x4, fixed_abs, tag = 'smem constant byte address 0x4 - core index']
  #allocation1 [shape = 'u32[72,128]{1,0:T(1,128)}', space=vmem, size = 0x9000, scoped, tag = 'internal scratch']
  %s0 = inlined_call_operand.hbm [shape: f32[16,96], index: 0, kind: input, shape index: {}]
  %s1 = inlined_call_operand.hbm [shape: f32[96,96], index: 1, kind: input, shape index: {}]
  %s2 = inlined_call_operand.vmem [shape: f32[1,96], index: 2, kind: input, shape index: {}]
  %s3 = inlined_call_operand.hbm [shape: f32[32,32], index: 3, kind: input, shape index: {}]
  %s4 = inlined_call_operand.vmem [shape: f32[1,32], index: 4, kind: input, shape index: {}]
  %s5 = inlined_call_operand.hbm [shape: f32[16,32], index: 5, kind: output, shape index: {}]
  %s6 = sld [smem:[#allocation0]]
  $region42: #{tpu_custom_call.1} parent=0
    _
  %s8 = ssub.s32 1, %s6
  %s9 = scalar_select 0, %s8, %s6
  $region1: #{tpu_custom_call.1} parent=0
    #allocation2 [shape = 'u8[8192]{0}', space=vmem, size = 0x2000, scoped, tag = 'input window, operand 0, single buffered']
    #allocation3 [shape = 's32[1]{0}', space=sflag, size = 0x4, scoped, tag = 'scoped memory for tpu_custom_call.1']
    #allocation4 [shape = 's32[1]{0}', space=sflag, size = 0x4, scoped, tag = 'scoped memory for tpu_custom_call.1']
    #allocation5 [shape = 'u8[49152]{0}', space=vmem, size = 0xc000, scoped, tag = 'input window, operand 1, single buffered']
    #allocation6 [shape = 's32[1]{0}', space=sflag, size = 0x4, scoped, tag = 'scoped memory for tpu_custom_call.1']
    #allocation7 [shape = 'u8[16384]{0}', space=vmem, size = 0x4000, scoped, tag = 'input window, operand 3, single buffered']
    #allocation8 [shape = 'u8[8192]{0}', space=vmem, size = 0x2000, scoped, tag = 'output window, operand 0, single buffered']
    %10 = vsyncpa [#allocation3], 0
    %11 = vsyncpa [#allocation6], 0
    %12 = vsyncpa [#allocation4], 0
    // Predicated region
    $region2: #{tpu_custom_call.1} parent=1 // pred_check
      _
    $region3: #{tpu_custom_call.1} parent=1 // pred_check_branch
      %14 = sbr.rel (0) target = $region5
    $region4: #{tpu_custom_call.1} parent=1 // pred_region
      %16 = vsyncadd [#allocation3], 0
      %s17 = sshll.u32 %s0, 4
      %s18 = int_to_ptr.hbm [resolvable:$true] %s17
      %s19 = sshll.u32 [#allocation2], 4
      %s20 = int_to_ptr.vmem [resolvable:$true] %s19
      %25 = dma.hbm_to_vmem [thread:$0]  %s18, 256, %s20, [#allocation3], 128, 128, 8
    $region5: #{tpu_custom_call.1} parent=1 // pred_fallthru
      _
    // Predicated region
    $region6: #{tpu_custom_call.1} parent=1 // pred_check
      _
    $region7: #{tpu_custom_call.1} parent=1 // pred_check_branch
      %27 = sbr.rel (0) target = $region9
    $region8: #{tpu_custom_call.1} parent=1 // pred_region
      %29 = vsyncadd [#allocation6], 0
      %s30 = sshll.u32 %s1, 4
      %s31 = int_to_ptr.hbm [resolvable:$true] %s30
      %s32 = sshll.u32 [#allocation5], 4
      %s33 = int_to_ptr.vmem [resolvable:$true] %s32
      %38 = dma.hbm_to_vmem [thread:$0]  %s31, 1536, %s33, [#allocation6], 128, 128, 8
    $region9: #{tpu_custom_call.1} parent=1 // pred_fallthru
      _
    // Predicated region
    $region10: #{tpu_custom_call.1} parent=1 // pred_check
      _
    $region11: #{tpu_custom_call.1} parent=1 // pred_check_branch
      %40 = sbr.rel (0) target = $region13
    $region12: #{tpu_custom_call.1} parent=1 // pred_region
      _
    $region13: #{tpu_custom_call.1} parent=1 // pred_fallthru
      _
    // Predicated region
    $region14: #{tpu_custom_call.1} parent=1 // pred_check
      _
    $region15: #{tpu_custom_call.1} parent=1 // pred_check_branch
      %42 = sbr.rel (0) target = $region17
    $region16: #{tpu_custom_call.1} parent=1 // pred_region
      %44 = vsyncadd [#allocation6], 0
      %s45 = sshll.u32 %s3, 4
      %s46 = int_to_ptr.hbm [resolvable:$true] %s45
      %s47 = sshll.u32 [#allocation7], 4
      %s48 = int_to_ptr.vmem [resolvable:$true] %s47
      %53 = dma.hbm_to_vmem [thread:$0]  %s46, 512, %s48, [#allocation6], 128, 128, 8
    $region17: #{tpu_custom_call.1} parent=1 // pred_fallthru
      _
    // Predicated region
    $region18: #{tpu_custom_call.1} parent=1 // pred_check
      _
    $region19: #{tpu_custom_call.1} parent=1 // pred_check_branch
      %55 = sbr.rel (0) target = $region21
    $region20: #{tpu_custom_call.1} parent=1 // pred_region
      _
    $region21: #{tpu_custom_call.1} parent=1 // pred_fallthru
      _
    // Predicated region
    $region22: #{tpu_custom_call.1} parent=1 // pred_check
      _
    $region23: #{tpu_custom_call.1} parent=1 // pred_check_branch
      %57 = sbr.rel (0) target = $region25
    $region24: #{tpu_custom_call.1} parent=1 // pred_region
      %59 = dma.done [#allocation3], 256
    $region25: #{tpu_custom_call.1} parent=1 // pred_fallthru
      _
    // Predicated region
    $region26: #{tpu_custom_call.1} parent=1 // pred_check
      _
    $region27: #{tpu_custom_call.1} parent=1 // pred_check_branch
      %61 = sbr.rel (0) target = $region29
    $region28: #{tpu_custom_call.1} parent=1 // pred_region
      %63 = dma.done [#allocation6], 1536
    $region29: #{tpu_custom_call.1} parent=1 // pred_fallthru
      _
    // Predicated region
    $region30: #{tpu_custom_call.1} parent=1 // pred_check
      _
    $region31: #{tpu_custom_call.1} parent=1 // pred_check_branch
      %65 = sbr.rel (0) target = $region33
    $region32: #{tpu_custom_call.1} parent=1 // pred_region
      %67 = dma.done [#allocation6], 512
    $region33: #{tpu_custom_call.1} parent=1 // pred_fallthru
      _
    %v69 = vld [vmem:[#allocation2] sm:$0xff]
    %v70 = vld [vmem:[#allocation2 + $0x8] sm:$0xff]
    %v71 = vpack.c.bf16 %v70, %v69
    %v72 = vld [vmem:[#allocation5] sm:$0xff]
    %v73 = vld [vmem:[#allocation5 + $0x8] sm:$0xff]
    %v74 = vld [vmem:[#allocation5 + $0x10] sm:$0xff]
    %v75 = vld [vmem:[#allocation5 + $0x18] sm:$0xff]
    %v76 = vld [vmem:[#allocation5 + $0x20] sm:$0xff]
    %v77 = vld [vmem:[#allocation5 + $0x28] sm:$0xff]
    %v78 = vld [vmem:[#allocation5 + $0x30] sm:$0xff]
    %v79 = vld [vmem:[#allocation5 + $0x38] sm:$0xff]
    %v80 = vld [vmem:[#allocation5 + $0x40] sm:$0xff]
    %v81 = vld [vmem:[#allocation5 + $0x48] sm:$0xff]
    %v82 = vld [vmem:[#allocation5 + $0x50] sm:$0xff]
    %v83 = vld [vmem:[#allocation5 + $0x58] sm:$0xff]
    %v84 = vpack.c.bf16 %v73, %v72
    %v85 = vpack.c.bf16 %v75, %v74
    %v86 = vpack.c.bf16 %v77, %v76
    %v87 = vpack.c.bf16 %v79, %v78
    %v88 = vpack.c.bf16 %v81, %v80
    %v89 = vpack.c.bf16 %v83, %v82
    %v90 = vld [vmem:[%s2] sm:$0x1]
    %v92 = vperm.slane %v90, 0
    %vm94 = vcmask 785408
    %v96 = vsel %vm94, %v71, 0
    %98 = vmatpush.bf16.msra.mxu0 0
    %99 = vmatpush.bf16.msra.mxu0 0
    %100 = vmatpush.bf16.msra.mxu0 %v89
    %101 = vmatpush.bf16.msra.mxu0 %v88
    %102 = vmatpush.bf16.msra.mxu0 %v87
    %103 = vmatpush.bf16.msra.mxu0 %v86
    %104 = vmatpush.bf16.msra.mxu0 %v85
    %105 = vmatpush.bf16.msra.mxu0 %v84
    %106 = vmatmul.bf16.gmra.mxu0 %v96
    %v107 = vpop.f32.mrf.mxu0
    %v108 = vadd.f32 %v92, %v107
    %v109 = vpop.f32.mrf.mxu0
    %v110 = vadd.f32 %v92, %v109
    %111 = vdwg.mxu0
    %v112 = vld [vmem:[%s4] sm:$0x1]
    %v113 = vpack.c.bf16 %v108, %v108
    %115 = vrot.lane.b32.xlu0 %v113, 96
    %v116 = vpop.permute.xlu0 %115
    %vm117 = vcmask 64512
    %v119 = vsel %vm117, %v113, 0
    %v122 = vsel %vm117, %v116, 0
    %124 = vmatpush.bf16.xpose.msra.mxu0 0
    %125 = vmatpush.bf16.xpose.msra.mxu0 0
    %126 = vmatpush.bf16.xpose.msra.mxu0 0
    %127 = vmatpush.bf16.xpose.msra.mxu0 0
    %128 = vmatpush.bf16.xpose.msra.mxu0 0
    %129 = vmatpush.bf16.xpose.msra.mxu0 0
    %130 = vmatpush.bf16.xpose.msra.mxu0 0
    %131 = vmatpush.bf16.xpose.msra.mxu0 %v122
    %132 = vmatmul.bf16.gmra.mxu0 %v119
    %v133 = vpop.f32.mrf.mxu0
    %v134 = vadd.f32 0.0, %v133
    %v135 = vpop.f32.mrf.mxu0
    %136 = vdwg.mxu0
    %v137 = vsel %vm117, %v134, -inf
    %138 = vmax.xlane.f32.xlu0 %v137
    %v139 = vpop.xlane.xlu0 %138
    %v140 = vsub.f32 %v134, %v139
    %v141 = vmul.f32 %v140, 1.442695
    %v142 = vpow.pop %v141
    %v143 = vsel %vm117, %v142, 0.0
    %144 = vadd.xlane.f32.xlu0 %v143
    %v145 = vpop.xlane.xlu0 %144
    %v146 = vrcp.pop %v145
    %v147 = vmul.f32 %v145, %v146
    %v148 = vsub.f32 1.0, %v147
    %v149 = vmul.f32 %v146, %v148
    %v150 = vadd.f32 %v146, %v149
    %vm151 = vweird.f32 %v145
    %vm152 = vweird.f32 %v146
    %vm153 = vmor %vm151, %vm152
    %v154 = vsel %vm153, %v146, %v150
    %v155 = vand.u32 2147483647, %v145
    %vm156 = vcmp.eq.f32.partialorder %v155, 8.507059e+37
    %v157 = vand.u32 %v145, 2147483648
    %v158 = vor.u32 1.1754944e-38, %v157
    %v159 = vsel %vm156, %v158, %v154
    %v160 = vpack.c.bf16 %v142, %v142
    %161 = vrot.lane.b32.xlu0 %v113, 64
    %v162 = vpop.permute.xlu0 %161
    %v164 = vsel %vm117, %v160, 0
    %vm166 = vcmask 1043456
    %v168 = vsel %vm166, %v162, 0
    %170 = vmatpush.bf16.msra.mxu0 0
    %171 = vmatpush.bf16.msra.mxu0 0
    %172 = vmatpush.bf16.msra.mxu0 0
    %173 = vmatpush.bf16.msra.mxu0 0
    %174 = vmatpush.bf16.msra.mxu0 0
    %175 = vmatpush.bf16.msra.mxu0 0
    %176 = vmatpush.bf16.msra.mxu0 0
    %177 = vmatpush.bf16.msra.mxu0 %v168
    %178 = vmatmul.bf16.gmra.mxu0 %v164
    %v179 = vpop.f32.mrf.mxu0
    %v180 = vadd.f32 0.0, %v179
    %v181 = vpop.f32.mrf.mxu0
    %182 = vdwg.mxu0
    %v183 = vmul.f32 %v180, %v159
    %v184 = vpack.c.bf16 %v183, %v183
    %v185 = vld [vmem:[#allocation7] sm:$0xff]
    %v186 = vpack.c.bf16 %v185, %v185
    %187 = vrot.lane.b32.xlu0 %v113, 120
    %v188 = vpop.permute.xlu0 %187
    %189 = vrot.lane.b32.xlu0 %v113, 88
    %v190 = vpop.permute.xlu0 %189
    %v192 = vsel %vm117, %v188, 0
    %v195 = vsel %vm117, %v190, 0
    %197 = vmatpush.bf16.xpose.msra.mxu0 0
    %198 = vmatpush.bf16.xpose.msra.mxu0 0
    %199 = vmatpush.bf16.xpose.msra.mxu0 0
    %200 = vmatpush.bf16.xpose.msra.mxu0 0
    %201 = vmatpush.bf16.xpose.msra.mxu0 0
    %202 = vmatpush.bf16.xpose.msra.mxu0 0
    %203 = vmatpush.bf16.xpose.msra.mxu0 0
    %204 = vmatpush.bf16.xpose.msra.mxu0 %v195
    %205 = vmatmul.bf16.gmra.mxu0 %v192
    %v206 = vpop.f32.mrf.mxu0
    %v207 = vadd.f32 0.0, %v206
    %v208 = vpop.f32.mrf.mxu0
    %209 = vdwg.mxu0
    %v210 = vsel %vm117, %v207, -inf
    %211 = vmax.xlane.f32.xlu0 %v210
    %v212 = vpop.xlane.xlu0 %211
    %v213 = vsub.f32 %v207, %v212
    %v214 = vmul.f32 %v213, 1.442695
    %v215 = vpow.pop %v214
    %v216 = vsel %vm117, %v215, 0.0
    %217 = vadd.xlane.f32.xlu0 %v216
    %v218 = vpop.xlane.xlu0 %217
    %v219 = vrcp.pop %v218
    %v220 = vmul.f32 %v218, %v219
    %v221 = vsub.f32 1.0, %v220
    %v222 = vmul.f32 %v219, %v221
    %v223 = vadd.f32 %v219, %v222
    %vm224 = vweird.f32 %v218
    %vm225 = vweird.f32 %v219
    %vm226 = vmor %vm224, %vm225
    %v227 = vsel %vm226, %v219, %v223
    %v228 = vand.u32 2147483647, %v218
    %vm229 = vcmp.eq.f32.partialorder %v228, 8.507059e+37
    %v230 = vand.u32 %v218, 2147483648
    %v231 = vor.u32 1.1754944e-38, %v230
    %v232 = vsel %vm229, %v231, %v227
    %v233 = vpack.c.bf16 %v215, %v215
    %234 = vrot.lane.b32.xlu0 %v113, 56
    %v235 = vpop.permute.xlu0 %234
    %v237 = vsel %vm117, %v233, 0
    %v240 = vsel %vm166, %v235, 0
    %242 = vmatpush.bf16.msra.mxu0 0
    %243 = vmatpush.bf16.msra.mxu0 0
    %244 = vmatpush.bf16.msra.mxu0 0
    %245 = vmatpush.bf16.msra.mxu0 0
    %246 = vmatpush.bf16.msra.mxu0 0
    %247 = vmatpush.bf16.msra.mxu0 0
    %248 = vmatpush.bf16.msra.mxu0 0
    %249 = vmatpush.bf16.msra.mxu0 %v240
    %250 = vmatmul.bf16.gmra.mxu0 %v237
    %v251 = vpop.f32.mrf.mxu0
    %v252 = vadd.f32 0.0, %v251
    %v253 = vpop.f32.mrf.mxu0
    %254 = vdwg.mxu0
    %v255 = vmul.f32 %v252, %v232
    %v256 = vpack.c.bf16 %v255, %v255
    %v257 = vld [vmem:[#allocation7 + $0x8] sm:$0xff]
    %v258 = vpack.c.bf16 %v257, %v257
    %v260 = vsel %vm117, %v256, 0
    %v263 = vsel %vm166, %v258, 0
    %265 = vmatpush.bf16.msra.mxu0 0
    %266 = vmatpush.bf16.msra.mxu0 0
    %267 = vmatpush.bf16.msra.mxu0 0
    %268 = vmatpush.bf16.msra.mxu0 0
    %269 = vmatpush.bf16.msra.mxu0 0
    %270 = vmatpush.bf16.msra.mxu0 0
    %271 = vmatpush.bf16.msra.mxu0 0
    %272 = vmatpush.bf16.msra.mxu0 %v263
    %273 = vmatmul.bf16.gmra.mxu0 %v260
    %v274 = vpop.f32.mrf.mxu0
    %v275 = vadd.f32 0.0, %v274
    %v276 = vpop.f32.mrf.mxu0
    %277 = vdwg.mxu0
    %v279 = vsel %vm117, %v184, 0
    %v282 = vsel %vm166, %v186, 0
    %284 = vmatpush.bf16.msra.mxu0 0
    %285 = vmatpush.bf16.msra.mxu0 0
    %286 = vmatpush.bf16.msra.mxu0 0
    %287 = vmatpush.bf16.msra.mxu0 0
    %288 = vmatpush.bf16.msra.mxu0 0
    %289 = vmatpush.bf16.msra.mxu0 0
    %290 = vmatpush.bf16.msra.mxu0 0
    %291 = vmatpush.bf16.msra.mxu0 %v282
    %292 = vmatmul.bf16.gmra.mxu0 %v279
    %v293 = vpop.f32.mrf.mxu0
    %v294 = vadd.f32 %v275, %v293
    %v295 = vpop.f32.mrf.mxu0
    %296 = vdwg.mxu0
    %297 = vrot.lane.b32.xlu0 %v113, 112
    %v298 = vpop.permute.xlu0 %297
    %299 = vrot.lane.b32.xlu0 %v113, 80
    %v300 = vpop.permute.xlu0 %299
    %v302 = vsel %vm117, %v298, 0
    %v305 = vsel %vm117, %v300, 0
    %307 = vmatpush.bf16.xpose.msra.mxu0 0
    %308 = vmatpush.bf16.xpose.msra.mxu0 0
    %309 = vmatpush.bf16.xpose.msra.mxu0 0
    %310 = vmatpush.bf16.xpose.msra.mxu0 0
    %311 = vmatpush.bf16.xpose.msra.mxu0 0
    %312 = vmatpush.bf16.xpose.msra.mxu0 0
    %313 = vmatpush.bf16.xpose.msra.mxu0 0
    %314 = vmatpush.bf16.xpose.msra.mxu0 %v305
    %315 = vmatmul.bf16.gmra.mxu0 %v302
    %v316 = vpop.f32.mrf.mxu0
    %v317 = vadd.f32 0.0, %v316
    %v318 = vpop.f32.mrf.mxu0
    %319 = vdwg.mxu0
    %v320 = vsel %vm117, %v317, -inf
    %321 = vmax.xlane.f32.xlu0 %v320
    %v322 = vpop.xlane.xlu0 %321
    %v323 = vsub.f32 %v317, %v322
    %v324 = vmul.f32 %v323, 1.442695
    %v325 = vpow.pop %v324
    %v326 = vsel %vm117, %v325, 0.0
    %327 = vadd.xlane.f32.xlu0 %v326
    %v328 = vpop.xlane.xlu0 %327
    %v329 = vrcp.pop %v328
    %v330 = vmul.f32 %v328, %v329
    %v331 = vsub.f32 1.0, %v330
    %v332 = vmul.f32 %v329, %v331
    %v333 = vadd.f32 %v329, %v332
    %vm334 = vweird.f32 %v328
    %vm335 = vweird.f32 %v329
    %vm336 = vmor %vm334, %vm335
    %v337 = vsel %vm336, %v329, %v333
    %v338 = vand.u32 2147483647, %v328
    %vm339 = vcmp.eq.f32.partialorder %v338, 8.507059e+37
    %v340 = vand.u32 %v328, 2147483648
    %v341 = vor.u32 1.1754944e-38, %v340
    %v342 = vsel %vm339, %v341, %v337
    %v343 = vpack.c.bf16 %v325, %v325
    %344 = vrot.lane.b32.xlu0 %v113, 48
    %v345 = vpop.permute.xlu0 %344
    %v347 = vsel %vm117, %v343, 0
    %v350 = vsel %vm166, %v345, 0
    %352 = vmatpush.bf16.msra.mxu0 0
    %353 = vmatpush.bf16.msra.mxu0 0
    %354 = vmatpush.bf16.msra.mxu0 0
    %355 = vmatpush.bf16.msra.mxu0 0
    %356 = vmatpush.bf16.msra.mxu0 0
    %357 = vmatpush.bf16.msra.mxu0 0
    %358 = vmatpush.bf16.msra.mxu0 0
    %359 = vmatpush.bf16.msra.mxu0 %v350
    %360 = vmatmul.bf16.gmra.mxu0 %v347
    %v361 = vpop.f32.mrf.mxu0
    %v362 = vadd.f32 0.0, %v361
    %v363 = vpop.f32.mrf.mxu0
    %364 = vdwg.mxu0
    %v365 = vmul.f32 %v362, %v342
    %v366 = vpack.c.bf16 %v365, %v365
    %v367 = vld [vmem:[#allocation7 + $0x10] sm:$0xff]
    %v368 = vpack.c.bf16 %v367, %v367
    %v370 = vsel %vm117, %v366, 0
    %v373 = vsel %vm166, %v368, 0
    %375 = vmatpush.bf16.msra.mxu0 0
    %376 = vmatpush.bf16.msra.mxu0 0
    %377 = vmatpush.bf16.msra.mxu0 0
    %378 = vmatpush.bf16.msra.mxu0 0
    %379 = vmatpush.bf16.msra.mxu0 0
    %380 = vmatpush.bf16.msra.mxu0 0
    %381 = vmatpush.bf16.msra.mxu0 0
    %382 = vmatpush.bf16.msra.mxu0 %v373
    %383 = vmatmul.bf16.gmra.mxu0 %v370
    %v384 = vpop.f32.mrf.mxu0
    %v385 = vadd.f32 0.0, %v384
    %v386 = vpop.f32.mrf.mxu0
    %387 = vdwg.mxu0
    %v388 = vadd.f32 %v294, %v385
    %389 = vrot.lane.b32.xlu0 %v113, 104
    %v390 = vpop.permute.xlu0 %389
    %391 = vrot.lane.b32.xlu0 %v113, 72
    %v392 = vpop.permute.xlu0 %391
    %v394 = vsel %vm117, %v390, 0
    %v397 = vsel %vm117, %v392, 0
    %399 = vmatpush.bf16.xpose.msra.mxu0 0
    %400 = vmatpush.bf16.xpose.msra.mxu0 0
    %401 = vmatpush.bf16.xpose.msra.mxu0 0
    %402 = vmatpush.bf16.xpose.msra.mxu0 0
    %403 = vmatpush.bf16.xpose.msra.mxu0 0
    %404 = vmatpush.bf16.xpose.msra.mxu0 0
    %405 = vmatpush.bf16.xpose.msra.mxu0 0
    %406 = vmatpush.bf16.xpose.msra.mxu0 %v397
    %407 = vmatmul.bf16.gmra.mxu0 %v394
    %v408 = vpop.f32.mrf.mxu0
    %v409 = vadd.f32 0.0, %v408
    %v410 = vpop.f32.mrf.mxu0
    %411 = vdwg.mxu0
    %v412 = vsel %vm117, %v409, -inf
    %413 = vmax.xlane.f32.xlu0 %v412
    %v414 = vpop.xlane.xlu0 %413
    %v415 = vsub.f32 %v409, %v414
    %v416 = vmul.f32 %v415, 1.442695
    %v417 = vpow.pop %v416
    %v418 = vsel %vm117, %v417, 0.0
    %419 = vadd.xlane.f32.xlu0 %v418
    %v420 = vpop.xlane.xlu0 %419
    %v421 = vrcp.pop %v420
    %v422 = vmul.f32 %v420, %v421
    %v423 = vsub.f32 1.0, %v422
    %v424 = vmul.f32 %v421, %v423
    %v425 = vadd.f32 %v421, %v424
    %vm426 = vweird.f32 %v420
    %vm427 = vweird.f32 %v421
    %vm428 = vmor %vm426, %vm427
    %v429 = vsel %vm428, %v421, %v425
    %v430 = vand.u32 2147483647, %v420
    %vm431 = vcmp.eq.f32.partialorder %v430, 8.507059e+37
    %v432 = vand.u32 %v420, 2147483648
    %v433 = vor.u32 1.1754944e-38, %v432
    %v434 = vsel %vm431, %v433, %v429
    %v435 = vpack.c.bf16 %v417, %v417
    %436 = vrot.lane.b32.xlu0 %v113, 40
    %v437 = vpop.permute.xlu0 %436
    %v439 = vsel %vm117, %v435, 0
    %v442 = vsel %vm166, %v437, 0
    %444 = vmatpush.bf16.msra.mxu0 0
    %445 = vmatpush.bf16.msra.mxu0 0
    %446 = vmatpush.bf16.msra.mxu0 0
    %447 = vmatpush.bf16.msra.mxu0 0
    %448 = vmatpush.bf16.msra.mxu0 0
    %449 = vmatpush.bf16.msra.mxu0 0
    %450 = vmatpush.bf16.msra.mxu0 0
    %451 = vmatpush.bf16.msra.mxu0 %v442
    %452 = vmatmul.bf16.gmra.mxu0 %v439
    %v453 = vpop.f32.mrf.mxu0
    %v454 = vadd.f32 0.0, %v453
    %v455 = vpop.f32.mrf.mxu0
    %456 = vdwg.mxu0
    %v457 = vmul.f32 %v454, %v434
    %v458 = vpack.c.bf16 %v457, %v457
    %v459 = vld [vmem:[#allocation7 + $0x18] sm:$0xff]
    %v460 = vpack.c.bf16 %v459, %v459
    %v462 = vsel %vm117, %v458, 0
    %v465 = vsel %vm166, %v460, 0
    %467 = vmatpush.bf16.msra.mxu0 0
    %468 = vmatpush.bf16.msra.mxu0 0
    %469 = vmatpush.bf16.msra.mxu0 0
    %470 = vmatpush.bf16.msra.mxu0 0
    %471 = vmatpush.bf16.msra.mxu0 0
    %472 = vmatpush.bf16.msra.mxu0 0
    %473 = vmatpush.bf16.msra.mxu0 0
    %474 = vmatpush.bf16.msra.mxu0 %v465
    %475 = vmatmul.bf16.gmra.mxu0 %v462
    %v476 = vpop.f32.mrf.mxu0
    %v477 = vadd.f32 0.0, %v476
    %v478 = vpop.f32.mrf.mxu0
    %479 = vdwg.mxu0
    %v480 = vadd.f32 %v388, %v477
    %v482 = vperm.slane %v112, 0
    %v484 = vadd.f32 %v480, %v482
    %v485 = vpack.c.bf16 %v110, %v110
    %487 = vrot.lane.b32.xlu0 %v485, 96
    %v488 = vpop.permute.xlu0 %487
    %v490 = vsel %vm117, %v485, 0
    %v493 = vsel %vm117, %v488, 0
    %495 = vmatpush.bf16.xpose.msra.mxu0 0
    %496 = vmatpush.bf16.xpose.msra.mxu0 0
    %497 = vmatpush.bf16.xpose.msra.mxu0 0
    %498 = vmatpush.bf16.xpose.msra.mxu0 0
    %499 = vmatpush.bf16.xpose.msra.mxu0 0
    %500 = vmatpush.bf16.xpose.msra.mxu0 0
    %501 = vmatpush.bf16.xpose.msra.mxu0 0
    %502 = vmatpush.bf16.xpose.msra.mxu0 %v493
    %503 = vmatmul.bf16.gmra.mxu0 %v490
    %v504 = vpop.f32.mrf.mxu0
    %v505 = vadd.f32 0.0, %v504
    %v506 = vpop.f32.mrf.mxu0
    %507 = vdwg.mxu0
    %v508 = vsel %vm117, %v505, -inf
    %509 = vmax.xlane.f32.xlu0 %v508
    %v510 = vpop.xlane.xlu0 %509
    %v511 = vsub.f32 %v505, %v510
    %v512 = vmul.f32 %v511, 1.442695
    %v513 = vpow.pop %v512
    %v514 = vsel %vm117, %v513, 0.0
    %515 = vadd.xlane.f32.xlu0 %v514
    %v516 = vpop.xlane.xlu0 %515
    %v517 = vrcp.pop %v516
    %v518 = vmul.f32 %v516, %v517
    %v519 = vsub.f32 1.0, %v518
    %v520 = vmul.f32 %v517, %v519
    %v521 = vadd.f32 %v517, %v520
    %vm522 = vweird.f32 %v516
    %vm523 = vweird.f32 %v517
    %vm524 = vmor %vm522, %vm523
    %v525 = vsel %vm524, %v517, %v521
    %v526 = vand.u32 2147483647, %v516
    %vm527 = vcmp.eq.f32.partialorder %v526, 8.507059e+37
    %v528 = vand.u32 %v516, 2147483648
    %v529 = vor.u32 1.1754944e-38, %v528
    %v530 = vsel %vm527, %v529, %v525
    %v531 = vpack.c.bf16 %v513, %v513
    %532 = vrot.lane.b32.xlu0 %v485, 64
    %v533 = vpop.permute.xlu0 %532
    %v535 = vsel %vm117, %v531, 0
    %v538 = vsel %vm166, %v533, 0
    %540 = vmatpush.bf16.msra.mxu0 0
    %541 = vmatpush.bf16.msra.mxu0 0
    %542 = vmatpush.bf16.msra.mxu0 0
    %543 = vmatpush.bf16.msra.mxu0 0
    %544 = vmatpush.bf16.msra.mxu0 0
    %545 = vmatpush.bf16.msra.mxu0 0
    %546 = vmatpush.bf16.msra.mxu0 0
    %547 = vmatpush.bf16.msra.mxu0 %v538
    %548 = vmatmul.bf16.gmra.mxu0 %v535
    %v549 = vpop.f32.mrf.mxu0
    %v550 = vadd.f32 0.0, %v549
    %v551 = vpop.f32.mrf.mxu0
    %552 = vdwg.mxu0
    %v553 = vmul.f32 %v550, %v530
    %v554 = vpack.c.bf16 %v553, %v553
    %555 = vrot.lane.b32.xlu0 %v485, 120
    %v556 = vpop.permute.xlu0 %555
    %557 = vrot.lane.b32.xlu0 %v485, 88
    %v558 = vpop.permute.xlu0 %557
    %v560 = vsel %vm117, %v556, 0
    %v563 = vsel %vm117, %v558, 0
    %565 = vmatpush.bf16.xpose.msra.mxu0 0
    %566 = vmatpush.bf16.xpose.msra.mxu0 0
    %567 = vmatpush.bf16.xpose.msra.mxu0 0
    %568 = vmatpush.bf16.xpose.msra.mxu0 0
    %569 = vmatpush.bf16.xpose.msra.mxu0 0
    %570 = vmatpush.bf16.xpose.msra.mxu0 0
    %571 = vmatpush.bf16.xpose.msra.mxu0 0
    %572 = vmatpush.bf16.xpose.msra.mxu0 %v563
    %573 = vmatmul.bf16.gmra.mxu0 %v560
    %v574 = vpop.f32.mrf.mxu0
    %v575 = vadd.f32 0.0, %v574
    %v576 = vpop.f32.mrf.mxu0
    %577 = vdwg.mxu0
    %v578 = vsel %vm117, %v575, -inf
    %579 = vmax.xlane.f32.xlu0 %v578
    %v580 = vpop.xlane.xlu0 %579
    %v581 = vsub.f32 %v575, %v580
    %v582 = vmul.f32 %v581, 1.442695
    %v583 = vpow.pop %v582
    %v584 = vsel %vm117, %v583, 0.0
    %585 = vadd.xlane.f32.xlu0 %v584
    %v586 = vpop.xlane.xlu0 %585
    %v587 = vrcp.pop %v586
    %v588 = vmul.f32 %v586, %v587
    %v589 = vsub.f32 1.0, %v588
    %v590 = vmul.f32 %v587, %v589
    %v591 = vadd.f32 %v587, %v590
    %vm592 = vweird.f32 %v586
    %vm593 = vweird.f32 %v587
    %vm594 = vmor %vm592, %vm593
    %v595 = vsel %vm594, %v587, %v591
    %v596 = vand.u32 2147483647, %v586
    %vm597 = vcmp.eq.f32.partialorder %v596, 8.507059e+37
    %v598 = vand.u32 %v586, 2147483648
    %v599 = vor.u32 1.1754944e-38, %v598
    %v600 = vsel %vm597, %v599, %v595
    %v601 = vpack.c.bf16 %v583, %v583
    %602 = vrot.lane.b32.xlu0 %v485, 56
    %v603 = vpop.permute.xlu0 %602
    %v605 = vsel %vm117, %v601, 0
    %v608 = vsel %vm166, %v603, 0
    %610 = vmatpush.bf16.msra.mxu0 0
    %611 = vmatpush.bf16.msra.mxu0 0
    %612 = vmatpush.bf16.msra.mxu0 0
    %613 = vmatpush.bf16.msra.mxu0 0
    %614 = vmatpush.bf16.msra.mxu0 0
    %615 = vmatpush.bf16.msra.mxu0 0
    %616 = vmatpush.bf16.msra.mxu0 0
    %617 = vmatpush.bf16.msra.mxu0 %v608
    %618 = vmatmul.bf16.gmra.mxu0 %v605
    %v619 = vpop.f32.mrf.mxu0
    %v620 = vadd.f32 0.0, %v619
    %v621 = vpop.f32.mrf.mxu0
    %622 = vdwg.mxu0
    %v623 = vmul.f32 %v620, %v600
    %v624 = vpack.c.bf16 %v623, %v623
    %v626 = vsel %vm117, %v624, 0
    %628 = vmatpush.bf16.msra.mxu0 0
    %629 = vmatpush.bf16.msra.mxu0 0
    %630 = vmatpush.bf16.msra.mxu0 0
    %631 = vmatpush.bf16.msra.mxu0 0
    %632 = vmatpush.bf16.msra.mxu0 0
    %633 = vmatpush.bf16.msra.mxu0 0
    %634 = vmatpush.bf16.msra.mxu0 0
    %635 = vmatpush.bf16.msra.mxu0 %v263
    %636 = vmatmul.bf16.gmra.mxu0 %v626
    %v637 = vpop.f32.mrf.mxu0
    %v638 = vadd.f32 0.0, %v637
    %v639 = vpop.f32.mrf.mxu0
    %640 = vdwg.mxu0
    %v642 = vsel %vm117, %v554, 0
    %644 = vmatpush.bf16.msra.mxu0 0
    %645 = vmatpush.bf16.msra.mxu0 0
    %646 = vmatpush.bf16.msra.mxu0 0
    %647 = vmatpush.bf16.msra.mxu0 0
    %648 = vmatpush.bf16.msra.mxu0 0
    %649 = vmatpush.bf16.msra.mxu0 0
    %650 = vmatpush.bf16.msra.mxu0 0
    %651 = vmatpush.bf16.msra.mxu0 %v282
    %652 = vmatmul.bf16.gmra.mxu0 %v642
    %v653 = vpop.f32.mrf.mxu0
    %v654 = vadd.f32 %v638, %v653
    %v655 = vpop.f32.mrf.mxu0
    %656 = vdwg.mxu0
    %657 = vrot.lane.b32.xlu0 %v485, 112
    %v658 = vpop.permute.xlu0 %657
    %659 = vrot.lane.b32.xlu0 %v485, 80
    %v660 = vpop.permute.xlu0 %659
    %v662 = vsel %vm117, %v658, 0
    %v665 = vsel %vm117, %v660, 0
    %667 = vmatpush.bf16.xpose.msra.mxu0 0
    %668 = vmatpush.bf16.xpose.msra.mxu0 0
    %669 = vmatpush.bf16.xpose.msra.mxu0 0
    %670 = vmatpush.bf16.xpose.msra.mxu0 0
    %671 = vmatpush.bf16.xpose.msra.mxu0 0
    %672 = vmatpush.bf16.xpose.msra.mxu0 0
    %673 = vmatpush.bf16.xpose.msra.mxu0 0
    %674 = vmatpush.bf16.xpose.msra.mxu0 %v665
    %675 = vmatmul.bf16.gmra.mxu0 %v662
    %v676 = vpop.f32.mrf.mxu0
    %v677 = vadd.f32 0.0, %v676
    %v678 = vpop.f32.mrf.mxu0
    %679 = vdwg.mxu0
    %v680 = vsel %vm117, %v677, -inf
    %681 = vmax.xlane.f32.xlu0 %v680
    %v682 = vpop.xlane.xlu0 %681
    %v683 = vsub.f32 %v677, %v682
    %v684 = vmul.f32 %v683, 1.442695
    %v685 = vpow.pop %v684
    %v686 = vsel %vm117, %v685, 0.0
    %687 = vadd.xlane.f32.xlu0 %v686
    %v688 = vpop.xlane.xlu0 %687
    %v689 = vrcp.pop %v688
    %v690 = vmul.f32 %v688, %v689
    %v691 = vsub.f32 1.0, %v690
    %v692 = vmul.f32 %v689, %v691
    %v693 = vadd.f32 %v689, %v692
    %vm694 = vweird.f32 %v688
    %vm695 = vweird.f32 %v689
    %vm696 = vmor %vm694, %vm695
    %v697 = vsel %vm696, %v689, %v693
    %v698 = vand.u32 2147483647, %v688
    %vm699 = vcmp.eq.f32.partialorder %v698, 8.507059e+37
    %v700 = vand.u32 %v688, 2147483648
    %v701 = vor.u32 1.1754944e-38, %v700
    %v702 = vsel %vm699, %v701, %v697
    %v703 = vpack.c.bf16 %v685, %v685
    %704 = vrot.lane.b32.xlu0 %v485, 48
    %v705 = vpop.permute.xlu0 %704
    %v707 = vsel %vm117, %v703, 0
    %v710 = vsel %vm166, %v705, 0
    %712 = vmatpush.bf16.msra.mxu0 0
    %713 = vmatpush.bf16.msra.mxu0 0
    %714 = vmatpush.bf16.msra.mxu0 0
    %715 = vmatpush.bf16.msra.mxu0 0
    %716 = vmatpush.bf16.msra.mxu0 0
    %717 = vmatpush.bf16.msra.mxu0 0
    %718 = vmatpush.bf16.msra.mxu0 0
    %719 = vmatpush.bf16.msra.mxu0 %v710
    %720 = vmatmul.bf16.gmra.mxu0 %v707
    %v721 = vpop.f32.mrf.mxu0
    %v722 = vadd.f32 0.0, %v721
    %v723 = vpop.f32.mrf.mxu0
    %724 = vdwg.mxu0
    %v725 = vmul.f32 %v722, %v702
    %v726 = vpack.c.bf16 %v725, %v725
    %v728 = vsel %vm117, %v726, 0
    %730 = vmatpush.bf16.msra.mxu0 0
    %731 = vmatpush.bf16.msra.mxu0 0
    %732 = vmatpush.bf16.msra.mxu0 0
    %733 = vmatpush.bf16.msra.mxu0 0
    %734 = vmatpush.bf16.msra.mxu0 0
    %735 = vmatpush.bf16.msra.mxu0 0
    %736 = vmatpush.bf16.msra.mxu0 0
    %737 = vmatpush.bf16.msra.mxu0 %v373
    %738 = vmatmul.bf16.gmra.mxu0 %v728
    %v739 = vpop.f32.mrf.mxu0
    %v740 = vadd.f32 0.0, %v739
    %v741 = vpop.f32.mrf.mxu0
    %742 = vdwg.mxu0
    %v743 = vadd.f32 %v654, %v740
    %744 = vrot.lane.b32.xlu0 %v485, 104
    %v745 = vpop.permute.xlu0 %744
    %746 = vrot.lane.b32.xlu0 %v485, 72
    %v747 = vpop.permute.xlu0 %746
    %v749 = vsel %vm117, %v745, 0
    %v752 = vsel %vm117, %v747, 0
    %754 = vmatpush.bf16.xpose.msra.mxu0 0
    %755 = vmatpush.bf16.xpose.msra.mxu0 0
    %756 = vmatpush.bf16.xpose.msra.mxu0 0
    %757 = vmatpush.bf16.xpose.msra.mxu0 0
    %758 = vmatpush.bf16.xpose.msra.mxu0 0
    %759 = vmatpush.bf16.xpose.msra.mxu0 0
    %760 = vmatpush.bf16.xpose.msra.mxu0 0
    %761 = vmatpush.bf16.xpose.msra.mxu0 %v752
    %762 = vmatmul.bf16.gmra.mxu0 %v749
    %v763 = vpop.f32.mrf.mxu0
    %v764 = vadd.f32 0.0, %v763
    %v765 = vpop.f32.mrf.mxu0
    %766 = vdwg.mxu0
    %v767 = vsel %vm117, %v764, -inf
    %768 = vmax.xlane.f32.xlu0 %v767
    %v769 = vpop.xlane.xlu0 %768
    %v770 = vsub.f32 %v764, %v769
    %v771 = vmul.f32 %v770, 1.442695
    %v772 = vpow.pop %v771
    %v773 = vsel %vm117, %v772, 0.0
    %774 = vadd.xlane.f32.xlu0 %v773
    %v775 = vpop.xlane.xlu0 %774
    %v776 = vrcp.pop %v775
    %v777 = vmul.f32 %v775, %v776
    %v778 = vsub.f32 1.0, %v777
    %v779 = vmul.f32 %v776, %v778
    %v780 = vadd.f32 %v776, %v779
    %vm781 = vweird.f32 %v775
    %vm782 = vweird.f32 %v776
    %vm783 = vmor %vm781, %vm782
    %v784 = vsel %vm783, %v776, %v780
    %v785 = vand.u32 2147483647, %v775
    %vm786 = vcmp.eq.f32.partialorder %v785, 8.507059e+37
    %v787 = vand.u32 %v775, 2147483648
    %v788 = vor.u32 1.1754944e-38, %v787
    %v789 = vsel %vm786, %v788, %v784
    %v790 = vpack.c.bf16 %v772, %v772
    %791 = vrot.lane.b32.xlu0 %v485, 40
    %v792 = vpop.permute.xlu0 %791
    %v794 = vsel %vm117, %v790, 0
    %v797 = vsel %vm166, %v792, 0
    %799 = vmatpush.bf16.msra.mxu0 0
    %800 = vmatpush.bf16.msra.mxu0 0
    %801 = vmatpush.bf16.msra.mxu0 0
    %802 = vmatpush.bf16.msra.mxu0 0
    %803 = vmatpush.bf16.msra.mxu0 0
    %804 = vmatpush.bf16.msra.mxu0 0
    %805 = vmatpush.bf16.msra.mxu0 0
    %806 = vmatpush.bf16.msra.mxu0 %v797
    %807 = vmatmul.bf16.gmra.mxu0 %v794
    %v808 = vpop.f32.mrf.mxu0
    %v809 = vadd.f32 0.0, %v808
    %v810 = vpop.f32.mrf.mxu0
    %811 = vdwg.mxu0
    %v812 = vmul.f32 %v809, %v789
    %v813 = vpack.c.bf16 %v812, %v812
    %v815 = vsel %vm117, %v813, 0
    %817 = vmatpush.bf16.msra.mxu0 0
    %818 = vmatpush.bf16.msra.mxu0 0
    %819 = vmatpush.bf16.msra.mxu0 0
    %820 = vmatpush.bf16.msra.mxu0 0
    %821 = vmatpush.bf16.msra.mxu0 0
    %822 = vmatpush.bf16.msra.mxu0 0
    %823 = vmatpush.bf16.msra.mxu0 0
    %824 = vmatpush.bf16.msra.mxu0 %v465
    %825 = vmatmul.bf16.gmra.mxu0 %v815
    %v826 = vpop.f32.mrf.mxu0
    %v827 = vadd.f32 0.0, %v826
    %v828 = vpop.f32.mrf.mxu0
    %829 = vdwg.mxu0
    %v830 = vadd.f32 %v743, %v827
    %v831 = vadd.f32 %v830, %v482
    %vm832 = vcmask 261120
    %833 = vst.msk [vmem:[#allocation8] sm:$0xff] %vm832, %v484
    %834 = vst.msk [vmem:[#allocation8 + $0x8] sm:$0xff] %vm832, %v831
    // Predicated region
    $region34: #{tpu_custom_call.1} parent=1 // pred_check
      _
    $region35: #{tpu_custom_call.1} parent=1 // pred_check_branch
      %836 = sbr.rel (0) target = $region37
    $region36: #{tpu_custom_call.1} parent=1 // pred_region
      %838 = vsyncadd [#allocation4], 0
      %s839 = sshll.u32 [#allocation8], 4
      %s840 = int_to_ptr.vmem [resolvable:$true] %s839
      %s841 = sshll.u32 %s5, 4
      %s842 = int_to_ptr.hbm [resolvable:$true] %s841
      %847 = dma.vmem_to_hbm [thread:$0]  %s840, 256, %s842, [#allocation4], 128, 128, 8
    $region37: #{tpu_custom_call.1} parent=1 // pred_fallthru
      _
    // Predicated region
    $region38: #{tpu_custom_call.1} parent=1 // pred_check
      _
    $region39: #{tpu_custom_call.1} parent=1 // pred_check_branch
      %849 = sbr.rel (0) target = $region41
    $region40: #{tpu_custom_call.1} parent=1 // pred_region
      %851 = dma.done [#allocation4], 256
    $region41: #{tpu_custom_call.1} parent=1 // pred_fallthru
      _
    %852 = vsyncpa [#allocation3], 1
    %853 = vsyncpa [#allocation6], 1
    %854 = vsyncpa [#allocation4], 1

</llo_original>
